<compile_context>
chip_gen: v5e
topology: v5e:2x2
jax: 0.10.0
libtpu: 0.0.40
codegen_flags: <defaults>
</compile_context>

<pallas_src>
import math

import jax
import jax.numpy as jnp
from jax import lax
from jax.experimental import pallas as pl
from jax.experimental.pallas import tpu as pltpu


# ----------------------------------------------------------------------------
# Reference (mirrors the PyTorch module __init__ / forward)
# ----------------------------------------------------------------------------
def make_pe_table(max_len: int, input_dim: int) -> jnp.ndarray:
    position = jnp.arange(max_len, dtype=jnp.float32)[:, None]
    div_term = jnp.exp(
        jnp.arange(0, input_dim, 2, dtype=jnp.float32) * -(math.log(10000.0) / input_dim)
    )
    pe = jnp.zeros((max_len, input_dim), dtype=jnp.float32)
    pe = pe.at[:, 0::2].set(jnp.sin(position * div_term))
    pe = pe.at[:, 1::2].set(jnp.cos(position * div_term))
    return pe


def masked_positional_encoding_ref(x, source_mask, positions, pe_table):
    pe = pe_table[positions]                                  # (B, L, D) gather
    return x + pe * source_mask[..., None].astype(x.dtype)


# ----------------------------------------------------------------------------
# Kernels
# ----------------------------------------------------------------------------
def _pe_kernel_packed(x_ref, pm_ref, epos_ref, emsk_ref, fp_ref, o_ref):
    """g rows packed into the lane axis; pos/mask expanded to lane width on the MXU.

    x_ref : (TL, g*D)  native dtype
    pm_ref: (TL, 2*g)  f32, [positions | mask] per packed row
    epos_ref, emsk_ref: (2*g, g*D) 0/1 expansion constants
    fp_ref: (2, g*D)   row0 = per-column frequency, row1 = phase (0 or pi/2)
    """
    pm = pm_ref[...]                                                    # (TL, 2g)
    pos_b = jnp.dot(pm, epos_ref[...],
                    precision=lax.Precision.HIGHEST,
                    preferred_element_type=jnp.float32)                 # (TL, gD)
    msk_b = jnp.dot(pm, emsk_ref[...],
                    precision=lax.Precision.HIGHEST,
                    preferred_element_type=jnp.float32)                 # (TL, gD)
    fp = fp_ref[...]                                                    # (2, gD)
    ang = pos_b * fp[0:1, :] + fp[1:2, :]                               # VALU
    pe = jnp.sin(ang)                                                   # single transcendental/elem
    o_ref[...] = (x_ref[...].astype(jnp.float32) + pe * msk_b).astype(o_ref.dtype)


def _pe_kernel_rowwise(x_ref, pos_ref, msk_ref, fp_ref, o_ref):
    """Fallback (g == 1): one row per sublane row, broadcast pos/mask across lanes."""
    fp = fp_ref[...]                                                    # (2, D)
    ang = pos_ref[...] * fp[0:1, :] + fp[1:2, :]                        # (TL,1)*(1,D) broadcast
    o_ref[...] = (x_ref[...].astype(jnp.float32)
                  + jnp.sin(ang) * msk_ref[...]).astype(o_ref.dtype)


# ----------------------------------------------------------------------------
# Wrapper
# ----------------------------------------------------------------------------
def masked_positional_encoding(x, source_mask, positions, *, row_tile: int | None = None):
    """
    x:           (B, L, D) float32 / bfloat16
    source_mask: (B, L)    0/1
    positions:   (B, L)    int
    returns      (B, L, D), = x + PE[positions] * mask[..., None]
    """
    B, L, D = x.shape
    assert D % 2 == 0, "input_dim must be even (same constraint as the PyTorch module)"
    N = B * L
    itemsize = jnp.dtype(x.dtype).itemsize

    # Lane-packing factor: smallest g with (g*D) % 128 == 0 (lane-dense stores).
    g = 128 // math.gcd(D, 128)
    if N % g != 0 or g > N:
        g = 1                      # fallback: unpacked rows (partial-lane stores if D < 128)
    Ng, gD = N // g, g * D

    # Per-column frequency / phase, cos(x) == sin(x + pi/2).
    half = jnp.exp(jnp.arange(0, D, 2, dtype=jnp.float32) * -(math.log(10000.0) / D))
    freq_d = jnp.repeat(half, 2)                                            # [d0,d0,d1,d1,...]
    phase_d = jnp.tile(jnp.array([0.0, math.pi / 2.0], jnp.float32), D // 2)
    fp = jnp.stack([jnp.tile(freq_d, g), jnp.tile(phase_d, g)], axis=0)     # (2, gD)

    # Row tile: ~2 MiB x-blocks on 64 MiB-VMEM parts (v7x), ~4 MiB on 128 MiB parts.
    try:
        vmem_cap = int(getattr(pltpu.get_tpu_info(), "vmem_capacity_bytes", 64 << 20))
    except Exception:
        vmem_cap = 64 << 20
    target_blk = (4 << 20) if vmem_cap > (96 << 20) else (2 << 20)
    TL = max(8, ((target_blk // (gD * 4)) // 8) * 8)       # sized against f32 temporaries
    if row_tile is not None:
        TL = min(TL, max(8, (row_tile // 8) * 8))
    if TL >= Ng:
        TL = Ng                                             # single block (block == full dim is legal)
    grid = (pl.cdiv(Ng, TL),)                               # ragged last tile clipped by Pallas

    x2 = x.reshape(Ng, gD)                                  # contiguous reshape, no cast / no copy

    if g > 1:
        pm = jnp.concatenate(
            [positions.reshape(Ng, g).astype(jnp.float32),
             source_mask.reshape(Ng, g).astype(jnp.float32)], axis=1)       # (Ng, 2g)
        eg = jnp.repeat(jnp.eye(g, dtype=jnp.float32), D, axis=1)           # (g, gD)
        zg = jnp.zeros((g, gD), jnp.float32)
        e_pos = jnp.concatenate([eg, zg], axis=0)                           # (2g, gD)
        e_msk = jnp.concatenate([zg, eg], axis=0)                           # (2g, gD)
        kernel = _pe_kernel_packed
        in_specs = [
            pl.BlockSpec((TL, gD), lambda i: (i, 0)),        # x rows (native dtype)
            pl.BlockSpec((TL, 2 * g), lambda i: (i, 0)),     # fused [positions | mask]
            pl.BlockSpec((2 * g, gD), lambda i: (0, 0)),     # position expansion constant
            pl.BlockSpec((2 * g, gD), lambda i: (0, 0)),     # mask expansion constant
            pl.BlockSpec((2, gD), lambda i: (0, 0)),         # frequency / phase constant
        ]
        args = (x2, pm, e_pos, e_msk, fp)
        n_narrow = 1
    else:
        pos2 = positions.reshape(N, 1).astype(jnp.float32)
        msk2 = source_mask.reshape(N, 1).astype(jnp.float32)
        kernel = _pe_kernel_rowwise
        in_specs = [
            pl.BlockSpec((TL, gD), lambda i: (i, 0)),        # x rows
            pl.BlockSpec((TL, 1), lambda i: (i, 0)),         # positions (f32)
            pl.BlockSpec((TL, 1), lambda i: (i, 0)),         # mask (f32)
            pl.BlockSpec((2, gD), lambda i: (0, 0)),         # frequency / phase constant
        ]
        args = (x2, pos2, msk2, fp)
        n_narrow = 2

    # VMEM budget: double-buffered x/out blocks, lane-padded narrow inputs,
    # in-kernel f32 temporaries, constants, + ~2 MiB headroom.
    x_blk = TL * gD * itemsize
    vmem_limit = (4 * x_blk
                  + 2 * n_narrow * TL * 128 * 4
                  + 6 * TL * gD * 4
                  + 4 * (2 * g) * gD * 4
                  + 4 * 2 * gD * 4
                  + (2 << 20))
    vmem_limit = int(min(max(vmem_limit, 8 << 20), (vmem_cap * 9) // 10))

    cost = pl.CostEstimate(
        flops=N * D * (4 + (4 * g if g > 1 else 0)),
        transcendentals=N * D,
        bytes_accessed=2 * N * D * itemsize + N * 2 * 4 + 2 * gD * 4
                       + (2 * (2 * g) * gD * 4 if g > 1 else 0),
    )

    out = pl.pallas_call(
        kernel,
        out_shape=jax.ShapeDtypeStruct((Ng, gD), x.dtype),
        grid_spec=pltpu.PrefetchScalarGridSpec(
            num_scalar_prefetch=0,
            grid=grid,
            in_specs=in_specs,
            out_specs=pl.BlockSpec((TL, gD), lambda i: (i, 0)),
        ),
        compiler_params=pltpu.CompilerParams(
            dimension_semantics=("parallel",),
            vmem_limit_bytes=vmem_limit,
        ),
        cost_estimate=cost,
    )(*args)

    return out.reshape(B, L, D)


# ----------------------------------------------------------------------------
# Self-test
# ----------------------------------------------------------------------------
if __name__ == "__main__":
    MAX_LEN = 100
    root = jax.random.PRNGKey(0)

    def run_case(B, L, D, row_tile=None):
        kx, kp, km = jax.random.split(jax.random.fold_in(root, B * 1000 + L * 10 + D), 3)
        x = jax.random.normal(kx, (B, L, D), dtype=jnp.float32)
        positions = jax.random.randint(kp, (B, L), 0, MAX_LEN, dtype=jnp.int32)
        source_mask = jax.random.bernoulli(km, 0.7, (B, L)).astype(jnp.float32)

        out = jax.block_until_ready(
            masked_positional_encoding(x, source_mask, positions, row_tile=row_tile))

        pe_table = make_pe_table(MAX_LEN, D)
        ref = masked_positional_encoding_ref(x, source_mask, positions, pe_table)
        assert out.shape == x.shape and out.dtype == x.dtype
        assert jnp.allclose(out, ref, atol=1e-4, rtol=1e-4), f"mismatch B={B} L={L} D={D}"

    run_case(2, 16, 32)               # lane-packed path (g=4), single block
    run_case(2, 24, 32, row_tile=8)   # lane-packed path, multi-step grid + ragged last tile
    run_case(3, 10, 32)               # N % g != 0 -> row-wise fallback path (g=1)

    print("KERNEL_OK")
</pallas_src>

<mosaic_0001>
module attributes {stable_mosaic.version = 11 : i64} {
  func.func @_pe_kernel_packed(%arg0: i32, %arg1: memref<8x128xf32, #tpu.memory_space<vmem>>, %arg2: memref<8x8xf32, #tpu.memory_space<vmem>>, %arg3: memref<8x128xf32, #tpu.memory_space<vmem>>, %arg4: memref<8x128xf32, #tpu.memory_space<vmem>>, %arg5: memref<2x128xf32, #tpu.memory_space<vmem>>, %arg6: memref<8x128xf32, #tpu.memory_space<vmem>>) attributes {dimension_semantics = [#tpu.dimension_semantics<parallel>], iteration_bounds = array<i64: 1>, scalar_prefetch = 0 : i64, scratch_operands = 0 : i64, tpu.core_type = #tpu.core_type<tc>, window_params = [{transform_indices = @transform_0, window_bounds = array<i64: 8, 128>}, {transform_indices = @transform_1, window_bounds = array<i64: 8, 8>}, {pipeline_mode = #tpu.pipeline_mode<synchronous>, transform_indices = @transform_2, window_bounds = array<i64: 8, 128>}, {pipeline_mode = #tpu.pipeline_mode<synchronous>, transform_indices = @transform_3, window_bounds = array<i64: 8, 128>}, {pipeline_mode = #tpu.pipeline_mode<synchronous>, transform_indices = @transform_4, window_bounds = array<i64: 2, 128>}, {transform_indices = @transform_5, window_bounds = array<i64: 8, 128>}]} {
    %c0 = arith.constant 0 : index
    %c0_0 = arith.constant 0 : index
    %0 = vector.load %arg2[%c0, %c0_0] : memref<8x8xf32, #tpu.memory_space<vmem>>, vector<8x8xf32>
    %c0_1 = arith.constant 0 : index
    %c0_2 = arith.constant 0 : index
    %1 = vector.load %arg3[%c0_1, %c0_2] : memref<8x128xf32, #tpu.memory_space<vmem>>, vector<8x128xf32>
    %cst = arith.constant dense<0.000000e+00> : vector<8x128xf32>
    %2 = tpu.matmul %0, %1, %cst {dimension_numbers = #tpu.dot_dimension_numbers<[1], [0], [0], [1], [0, 0, 1, 1], [], []>, precision = #tpu.contract_precision<fp32>} : vector<8x8xf32>, vector<8x128xf32>, vector<8x128xf32> -> vector<8x128xf32>
    %c0_3 = arith.constant 0 : index
    %c0_4 = arith.constant 0 : index
    %3 = vector.load %arg4[%c0_3, %c0_4] : memref<8x128xf32, #tpu.memory_space<vmem>>, vector<8x128xf32>
    %cst_5 = arith.constant dense<0.000000e+00> : vector<8x128xf32>
    %4 = tpu.matmul %0, %3, %cst_5 {dimension_numbers = #tpu.dot_dimension_numbers<[1], [0], [0], [1], [0, 0, 1, 1], [], []>, precision = #tpu.contract_precision<fp32>} : vector<8x8xf32>, vector<8x128xf32>, vector<8x128xf32> -> vector<8x128xf32>
    %c0_6 = arith.constant 0 : index
    %c0_7 = arith.constant 0 : index
    %5 = vector.load %arg5[%c0_6, %c0_7] : memref<2x128xf32, #tpu.memory_space<vmem>>, vector<2x128xf32>
    %6 = vector.extract_strided_slice %5 {offsets = [0, 0], sizes = [1, 128], strides = [1, 1]} : vector<2x128xf32> to vector<1x128xf32>
    %7 = vector.broadcast %6 : vector<1x128xf32> to vector<8x128xf32>
    %8 = arith.mulf %2, %7 : vector<8x128xf32>
    %9 = vector.extract_strided_slice %5 {offsets = [1, 0], sizes = [1, 128], strides = [1, 1]} : vector<2x128xf32> to vector<1x128xf32>
    %10 = vector.broadcast %9 : vector<1x128xf32> to vector<8x128xf32>
    %11 = arith.addf %8, %10 : vector<8x128xf32>
    %12 = math.sin %11 : vector<8x128xf32>
    %c0_8 = arith.constant 0 : index
    %c0_9 = arith.constant 0 : index
    %13 = vector.load %arg1[%c0_8, %c0_9] : memref<8x128xf32, #tpu.memory_space<vmem>>, vector<8x128xf32>
    %14 = arith.mulf %12, %4 : vector<8x128xf32>
    %15 = arith.addf %13, %14 : vector<8x128xf32>
    %c0_10 = arith.constant 0 : index
    %c0_11 = arith.constant 0 : index
    %16 = vector.load %arg6[%c0_10, %c0_11] : memref<8x128xf32, #tpu.memory_space<vmem>>, vector<8x128xf32>
    tpu.vector_store %arg6[%c0_10, %c0_11], %15 {strides = array<i32>} : memref<8x128xf32, #tpu.memory_space<vmem>>, vector<8x128xf32>,
    return
  }
  func.func @transform_0(%arg0: i32) -> (i32, i32) {
    %c0_i32 = arith.constant 0 : i32
    %c0_i32_0 = arith.constant 0 : i32
    return %arg0, %c0_i32 : i32, i32
  }
  func.func @transform_1(%arg0: i32) -> (i32, i32) {
    %c0_i32 = arith.constant 0 : i32
    %c0_i32_0 = arith.constant 0 : i32
    return %arg0, %c0_i32 : i32, i32
  }
  func.func @transform_2(%arg0: i32) -> (i32, i32) {
    %c0_i32 = arith.constant 0 : i32
    %c0_i32_0 = arith.constant 0 : i32
    %c0_i32_1 = arith.constant 0 : i32
    return %c0_i32, %c0_i32_0 : i32, i32
  }
  func.func @transform_3(%arg0: i32) -> (i32, i32) {
    %c0_i32 = arith.constant 0 : i32
    %c0_i32_0 = arith.constant 0 : i32
    %c0_i32_1 = arith.constant 0 : i32
    return %c0_i32, %c0_i32_0 : i32, i32
  }
  func.func @transform_4(%arg0: i32) -> (i32, i32) {
    %c0_i32 = arith.constant 0 : i32
    %c0_i32_0 = arith.constant 0 : i32
    %c0_i32_1 = arith.constant 0 : i32
    return %c0_i32, %c0_i32_0 : i32, i32
  }
  func.func @transform_5(%arg0: i32) -> (i32, i32) {
    %c0_i32 = arith.constant 0 : i32
    %c0_i32_0 = arith.constant 0 : i32
    return %arg0, %c0_i32 : i32, i32
  }
}

</mosaic_0001>

<llo_original>
// kernel: tpu_custom_call.1
$region0: #{tpu_custom_call.1}
  #allocation0 [shape = 'u32[]', space=smem, size = 0x4, offset = 0x4, fixed_abs, tag = 'smem constant byte address 0x4 - core index']
  #allocation1 [shape = 'u32[72,128]{1,0:T(1,128)}', space=vmem, size = 0x9000, scoped, tag = 'internal scratch']
  %s0 = inlined_call_operand.hbm [shape: f32[8,128], index: 0, kind: input, shape index: {}]
  %s1 = inlined_call_operand.hbm [shape: f32[8,8], index: 1, kind: input, shape index: {}]
  %s2 = inlined_call_operand.hbm [shape: f32[8,128], index: 2, kind: input, shape index: {}]
  %s3 = inlined_call_operand.hbm [shape: f32[8,128], index: 3, kind: input, shape index: {}]
  %s4 = inlined_call_operand.vmem [shape: f32[2,128], index: 4, kind: input, shape index: {}]
  %s5 = inlined_call_operand.hbm [shape: f32[8,128], index: 5, kind: output, shape index: {}]
  %s6 = sld [smem:[#allocation0]]
  $region46: #{tpu_custom_call.1} parent=0
    _
  %s8 = ssub.s32 1, %s6
  %s9 = scalar_select 0, %s8, %s6
  $region1: #{tpu_custom_call.1} parent=0
    #allocation2 [shape = 'u8[4096]{0}', space=vmem, size = 0x1000, scoped, tag = 'input window, operand 0, single buffered']
    #allocation3 [shape = 's32[1]{0}', space=sflag, size = 0x4, scoped, tag = 'scoped memory for tpu_custom_call.1']
    #allocation4 [shape = 's32[1]{0}', space=sflag, size = 0x4, scoped, tag = 'scoped memory for tpu_custom_call.1']
    #allocation5 [shape = 'u8[4096]{0}', space=vmem, size = 0x1000, scoped, tag = 'input window, operand 1, single buffered']
    #allocation6 [shape = 's32[1]{0}', space=sflag, size = 0x4, scoped, tag = 'scoped memory for tpu_custom_call.1']
    #allocation7 [shape = 'u8[4096]{0}', space=vmem, size = 0x1000, scoped, tag = 'input window, operand 2, single buffered']
    #allocation8 [shape = 'u8[4096]{0}', space=vmem, size = 0x1000, scoped, tag = 'input window, operand 3, single buffered']
    #allocation9 [shape = 's32[1]{0}', space=sflag, size = 0x4, scoped, tag = 'scoped memory for tpu_custom_call.1']
    #allocation10 [shape = 'u8[4096]{0}', space=vmem, size = 0x1000, scoped, tag = 'output window, operand 0, single buffered']
    %10 = vsyncpa [#allocation3], 0
    %11 = vsyncpa [#allocation6], 0
    %12 = vsyncpa [#allocation9], 0
    %13 = vsyncpa [#allocation4], 0
    // Predicated region
    $region2: #{tpu_custom_call.1} parent=1 // pred_check
      _
    $region3: #{tpu_custom_call.1} parent=1 // pred_check_branch
      %15 = sbr.rel (0) target = $region5
    $region4: #{tpu_custom_call.1} parent=1 // pred_region
      %17 = vsyncadd [#allocation3], 0
      %s19 = sshll.u32 %s0, 4
      %s20 = int_to_ptr.hbm [resolvable:$true] %s19
      %s21 = sshll.u32 [#allocation2], 4
      %s22 = int_to_ptr.vmem [resolvable:$true] %s21
      %24 = dma.hbm_to_vmem [thread:$0]  %s20, 128, %s22, [#allocation3]
    $region5: #{tpu_custom_call.1} parent=1 // pred_fallthru
      _
    // Predicated region
    $region6: #{tpu_custom_call.1} parent=1 // pred_check
      _
    $region7: #{tpu_custom_call.1} parent=1 // pred_check_branch
      %26 = sbr.rel (0) target = $region9
    $region8: #{tpu_custom_call.1} parent=1 // pred_region
      %28 = vsyncadd [#allocation6], 0
      %s30 = sshll.u32 %s1, 4
      %s31 = int_to_ptr.hbm [resolvable:$true] %s30
      %s32 = sshll.u32 [#allocation5], 4
      %s33 = int_to_ptr.vmem [resolvable:$true] %s32
      %35 = dma.hbm_to_vmem [thread:$0]  %s31, 128, %s33, [#allocation6]
    $region9: #{tpu_custom_call.1} parent=1 // pred_fallthru
      _
    // Predicated region
    $region10: #{tpu_custom_call.1} parent=1 // pred_check
      _
    $region11: #{tpu_custom_call.1} parent=1 // pred_check_branch
      %37 = sbr.rel (0) target = $region13
    $region12: #{tpu_custom_call.1} parent=1 // pred_region
      %39 = vsyncadd [#allocation6], 0
      %s41 = sshll.u32 %s2, 4
      %s42 = int_to_ptr.hbm [resolvable:$true] %s41
      %s43 = sshll.u32 [#allocation7], 4
      %s44 = int_to_ptr.vmem [resolvable:$true] %s43
      %46 = dma.hbm_to_vmem [thread:$0]  %s42, 128, %s44, [#allocation6]
    $region13: #{tpu_custom_call.1} parent=1 // pred_fallthru
      _
    // Predicated region
    $region14: #{tpu_custom_call.1} parent=1 // pred_check
      _
    $region15: #{tpu_custom_call.1} parent=1 // pred_check_branch
      %48 = sbr.rel (0) target = $region17
    $region16: #{tpu_custom_call.1} parent=1 // pred_region
      %50 = vsyncadd [#allocation9], 0
      %s52 = sshll.u32 %s3, 4
      %s53 = int_to_ptr.hbm [resolvable:$true] %s52
      %s54 = sshll.u32 [#allocation8], 4
      %s55 = int_to_ptr.vmem [resolvable:$true] %s54
      %57 = dma.hbm_to_vmem [thread:$0]  %s53, 128, %s55, [#allocation9]
    $region17: #{tpu_custom_call.1} parent=1 // pred_fallthru
      _
    // Predicated region
    $region18: #{tpu_custom_call.1} parent=1 // pred_check
      _
    $region19: #{tpu_custom_call.1} parent=1 // pred_check_branch
      %59 = sbr.rel (0) target = $region21
    $region20: #{tpu_custom_call.1} parent=1 // pred_region
      _
    $region21: #{tpu_custom_call.1} parent=1 // pred_fallthru
      _
    // Predicated region
    $region22: #{tpu_custom_call.1} parent=1 // pred_check
      _
    $region23: #{tpu_custom_call.1} parent=1 // pred_check_branch
      %61 = sbr.rel (0) target = $region25
    $region24: #{tpu_custom_call.1} parent=1 // pred_region
      %63 = dma.done [#allocation3], 128
    $region25: #{tpu_custom_call.1} parent=1 // pred_fallthru
      _
    // Predicated region
    $region26: #{tpu_custom_call.1} parent=1 // pred_check
      _
    $region27: #{tpu_custom_call.1} parent=1 // pred_check_branch
      %65 = sbr.rel (0) target = $region29
    $region28: #{tpu_custom_call.1} parent=1 // pred_region
      %67 = dma.done [#allocation6], 128
    $region29: #{tpu_custom_call.1} parent=1 // pred_fallthru
      _
    // Predicated region
    $region30: #{tpu_custom_call.1} parent=1 // pred_check
      _
    $region31: #{tpu_custom_call.1} parent=1 // pred_check_branch
      %69 = sbr.rel (0) target = $region33
    $region32: #{tpu_custom_call.1} parent=1 // pred_region
      %71 = dma.done [#allocation6], 128
    $region33: #{tpu_custom_call.1} parent=1 // pred_fallthru
      _
    // Predicated region
    $region34: #{tpu_custom_call.1} parent=1 // pred_check
      _
    $region35: #{tpu_custom_call.1} parent=1 // pred_check_branch
      %73 = sbr.rel (0) target = $region37
    $region36: #{tpu_custom_call.1} parent=1 // pred_region
      %75 = dma.done [#allocation9], 128
    $region37: #{tpu_custom_call.1} parent=1 // pred_fallthru
      _
    %v76 = vld [vmem:[#allocation5] sm:$0xff]
    %v77 = vld [vmem:[#allocation7] sm:$0xff]
    %vm78 = vcmask 64512
    %v80 = vsel %vm78, %v76, 0
    %82 = vmatpush.msra.mxu0 0.0
    %83 = vmatpush.msra.mxu0 0.0
    %84 = vmatpush.msra.mxu0 0.0
    %85 = vmatpush.msra.mxu0 0.0
    %86 = vmatpush.msra.mxu0 0.0
    %87 = vmatpush.msra.mxu0 0.0
    %88 = vmatpush.msra.mxu0 0.0
    %89 = vmatpush.msra.mxu0 0.0
    %90 = vmatpush.msra.mxu0 0.0
    %91 = vmatpush.msra.mxu0 0.0
    %92 = vmatpush.msra.mxu0 0.0
    %93 = vmatpush.msra.mxu0 0.0
    %94 = vmatpush.msra.mxu0 0.0
    %95 = vmatpush.msra.mxu0 0.0
    %96 = vmatpush.msra.mxu0 0.0
    %v97 = vand.u32 %v77, 4294901760
    %98 = vmatpush.msra.mxu0 %v97
    %v99 = vand.u32 %v80, 4294901760
    %v100 = vsub.f32 %v80, %v99
    %v101 = vand.u32 %v100, 4294901760
    %v102 = vsub.f32 %v100, %v101
    %v103 = vand.u32 %v102, 4294901760
    %104 = vmatmul.f32.gmra.mxu0 %v103
    %v105 = vpop.f32.mrf.mxu0
    %v106 = vadd.f32 0.0, %v105
    %107 = vdwg.mxu0
    %108 = vmatpush.msra.mxu0 0.0
    %109 = vmatpush.msra.mxu0 0.0
    %110 = vmatpush.msra.mxu0 0.0
    %111 = vmatpush.msra.mxu0 0.0
    %112 = vmatpush.msra.mxu0 0.0
    %113 = vmatpush.msra.mxu0 0.0
    %114 = vmatpush.msra.mxu0 0.0
    %115 = vmatpush.msra.mxu0 0.0
    %116 = vmatpush.msra.mxu0 0.0
    %117 = vmatpush.msra.mxu0 0.0
    %118 = vmatpush.msra.mxu0 0.0
    %119 = vmatpush.msra.mxu0 0.0
    %120 = vmatpush.msra.mxu0 0.0
    %121 = vmatpush.msra.mxu0 0.0
    %122 = vmatpush.msra.mxu0 0.0
    %v123 = vand.u32 %v77, 4294901760
    %v124 = vsub.f32 %v77, %v123
    %v125 = vand.u32 %v124, 4294901760
    %v126 = vsub.f32 %v124, %v125
    %v127 = vand.u32 %v126, 4294901760
    %128 = vmatpush.msra.mxu0 %v127
    %v129 = vand.u32 %v80, 4294901760
    %130 = vmatmul.f32.gmra.mxu0 %v129
    %v131 = vpop.f32.mrf.mxu0
    %v132 = vadd.f32 %v106, %v131
    %133 = vdwg.mxu0
    %134 = vmatpush.msra.mxu0 0.0
    %135 = vmatpush.msra.mxu0 0.0
    %136 = vmatpush.msra.mxu0 0.0
    %137 = vmatpush.msra.mxu0 0.0
    %138 = vmatpush.msra.mxu0 0.0
    %139 = vmatpush.msra.mxu0 0.0
    %140 = vmatpush.msra.mxu0 0.0
    %141 = vmatpush.msra.mxu0 0.0
    %142 = vmatpush.msra.mxu0 0.0
    %143 = vmatpush.msra.mxu0 0.0
    %144 = vmatpush.msra.mxu0 0.0
    %145 = vmatpush.msra.mxu0 0.0
    %146 = vmatpush.msra.mxu0 0.0
    %147 = vmatpush.msra.mxu0 0.0
    %148 = vmatpush.msra.mxu0 0.0
    %v149 = vand.u32 %v77, 4294901760
    %v150 = vsub.f32 %v77, %v149
    %151 = vmatpush.msra.mxu0 %v150
    %v152 = vand.u32 %v80, 4294901760
    %v153 = vsub.f32 %v80, %v152
    %154 = vmatmul.f32.gmra.mxu0 %v153
    %v155 = vpop.f32.mrf.mxu0
    %v156 = vadd.f32 %v132, %v155
    %157 = vdwg.mxu0
    %158 = vmatpush.msra.mxu0 0.0
    %159 = vmatpush.msra.mxu0 0.0
    %160 = vmatpush.msra.mxu0 0.0
    %161 = vmatpush.msra.mxu0 0.0
    %162 = vmatpush.msra.mxu0 0.0
    %163 = vmatpush.msra.mxu0 0.0
    %164 = vmatpush.msra.mxu0 0.0
    %165 = vmatpush.msra.mxu0 0.0
    %166 = vmatpush.msra.mxu0 0.0
    %167 = vmatpush.msra.mxu0 0.0
    %168 = vmatpush.msra.mxu0 0.0
    %169 = vmatpush.msra.mxu0 0.0
    %170 = vmatpush.msra.mxu0 0.0
    %171 = vmatpush.msra.mxu0 0.0
    %172 = vmatpush.msra.mxu0 0.0
    %v173 = vand.u32 %v77, 4294901760
    %174 = vmatpush.msra.mxu0 %v173
    %v175 = vand.u32 %v80, 4294901760
    %v176 = vsub.f32 %v80, %v175
    %v177 = vand.u32 %v176, 4294901760
    %178 = vmatmul.f32.gmra.mxu0 %v177
    %v179 = vpop.f32.mrf.mxu0
    %v180 = vadd.f32 %v156, %v179
    %181 = vdwg.mxu0
    %182 = vmatpush.msra.mxu0 0.0
    %183 = vmatpush.msra.mxu0 0.0
    %184 = vmatpush.msra.mxu0 0.0
    %185 = vmatpush.msra.mxu0 0.0
    %186 = vmatpush.msra.mxu0 0.0
    %187 = vmatpush.msra.mxu0 0.0
    %188 = vmatpush.msra.mxu0 0.0
    %189 = vmatpush.msra.mxu0 0.0
    %190 = vmatpush.msra.mxu0 0.0
    %191 = vmatpush.msra.mxu0 0.0
    %192 = vmatpush.msra.mxu0 0.0
    %193 = vmatpush.msra.mxu0 0.0
    %194 = vmatpush.msra.mxu0 0.0
    %195 = vmatpush.msra.mxu0 0.0
    %196 = vmatpush.msra.mxu0 0.0
    %v197 = vand.u32 %v77, 4294901760
    %v198 = vsub.f32 %v77, %v197
    %v199 = vand.u32 %v198, 4294901760
    %200 = vmatpush.msra.mxu0 %v199
    %v201 = vand.u32 %v80, 4294901760
    %202 = vmatmul.f32.gmra.mxu0 %v201
    %v203 = vpop.f32.mrf.mxu0
    %v204 = vadd.f32 %v180, %v203
    %205 = vdwg.mxu0
    %206 = vmatpush.msra.mxu0 0.0
    %207 = vmatpush.msra.mxu0 0.0
    %208 = vmatpush.msra.mxu0 0.0
    %209 = vmatpush.msra.mxu0 0.0
    %210 = vmatpush.msra.mxu0 0.0
    %211 = vmatpush.msra.mxu0 0.0
    %212 = vmatpush.msra.mxu0 0.0
    %213 = vmatpush.msra.mxu0 0.0
    %214 = vmatpush.msra.mxu0 0.0
    %215 = vmatpush.msra.mxu0 0.0
    %216 = vmatpush.msra.mxu0 0.0
    %217 = vmatpush.msra.mxu0 0.0
    %218 = vmatpush.msra.mxu0 0.0
    %219 = vmatpush.msra.mxu0 0.0
    %220 = vmatpush.msra.mxu0 0.0
    %v221 = vand.u32 %v77, 4294901760
    %222 = vmatpush.msra.mxu0 %v221
    %v223 = vand.u32 %v80, 4294901760
    %224 = vmatmul.f32.gmra.mxu0 %v223
    %v225 = vpop.f32.mrf.mxu0
    %v226 = vadd.f32 %v204, %v225
    %227 = vdwg.mxu0
    %v228 = vld [vmem:[#allocation8] sm:$0xff]
    %229 = vmatpush.msra.mxu0 0.0
    %230 = vmatpush.msra.mxu0 0.0
    %231 = vmatpush.msra.mxu0 0.0
    %232 = vmatpush.msra.mxu0 0.0
    %233 = vmatpush.msra.mxu0 0.0
    %234 = vmatpush.msra.mxu0 0.0
    %235 = vmatpush.msra.mxu0 0.0
    %236 = vmatpush.msra.mxu0 0.0
    %237 = vmatpush.msra.mxu0 0.0
    %238 = vmatpush.msra.mxu0 0.0
    %239 = vmatpush.msra.mxu0 0.0
    %240 = vmatpush.msra.mxu0 0.0
    %241 = vmatpush.msra.mxu0 0.0
    %242 = vmatpush.msra.mxu0 0.0
    %243 = vmatpush.msra.mxu0 0.0
    %v244 = vand.u32 %v228, 4294901760
    %245 = vmatpush.msra.mxu0 %v244
    %v246 = vand.u32 %v80, 4294901760
    %v247 = vsub.f32 %v80, %v246
    %v248 = vand.u32 %v247, 4294901760
    %v249 = vsub.f32 %v247, %v248
    %v250 = vand.u32 %v249, 4294901760
    %251 = vmatmul.f32.gmra.mxu0 %v250
    %v252 = vpop.f32.mrf.mxu0
    %v253 = vadd.f32 0.0, %v252
    %254 = vdwg.mxu0
    %255 = vmatpush.msra.mxu0 0.0
    %256 = vmatpush.msra.mxu0 0.0
    %257 = vmatpush.msra.mxu0 0.0
    %258 = vmatpush.msra.mxu0 0.0
    %259 = vmatpush.msra.mxu0 0.0
    %260 = vmatpush.msra.mxu0 0.0
    %261 = vmatpush.msra.mxu0 0.0
    %262 = vmatpush.msra.mxu0 0.0
    %263 = vmatpush.msra.mxu0 0.0
    %264 = vmatpush.msra.mxu0 0.0
    %265 = vmatpush.msra.mxu0 0.0
    %266 = vmatpush.msra.mxu0 0.0
    %267 = vmatpush.msra.mxu0 0.0
    %268 = vmatpush.msra.mxu0 0.0
    %269 = vmatpush.msra.mxu0 0.0
    %v270 = vand.u32 %v228, 4294901760
    %v271 = vsub.f32 %v228, %v270
    %v272 = vand.u32 %v271, 4294901760
    %v273 = vsub.f32 %v271, %v272
    %v274 = vand.u32 %v273, 4294901760
    %275 = vmatpush.msra.mxu0 %v274
    %v276 = vand.u32 %v80, 4294901760
    %277 = vmatmul.f32.gmra.mxu0 %v276
    %v278 = vpop.f32.mrf.mxu0
    %v279 = vadd.f32 %v253, %v278
    %280 = vdwg.mxu0
    %281 = vmatpush.msra.mxu0 0.0
    %282 = vmatpush.msra.mxu0 0.0
    %283 = vmatpush.msra.mxu0 0.0
    %284 = vmatpush.msra.mxu0 0.0
    %285 = vmatpush.msra.mxu0 0.0
    %286 = vmatpush.msra.mxu0 0.0
    %287 = vmatpush.msra.mxu0 0.0
    %288 = vmatpush.msra.mxu0 0.0
    %289 = vmatpush.msra.mxu0 0.0
    %290 = vmatpush.msra.mxu0 0.0
    %291 = vmatpush.msra.mxu0 0.0
    %292 = vmatpush.msra.mxu0 0.0
    %293 = vmatpush.msra.mxu0 0.0
    %294 = vmatpush.msra.mxu0 0.0
    %295 = vmatpush.msra.mxu0 0.0
    %v296 = vand.u32 %v228, 4294901760
    %v297 = vsub.f32 %v228, %v296
    %298 = vmatpush.msra.mxu0 %v297
    %v299 = vand.u32 %v80, 4294901760
    %v300 = vsub.f32 %v80, %v299
    %301 = vmatmul.f32.gmra.mxu0 %v300
    %v302 = vpop.f32.mrf.mxu0
    %v303 = vadd.f32 %v279, %v302
    %304 = vdwg.mxu0
    %305 = vmatpush.msra.mxu0 0.0
    %306 = vmatpush.msra.mxu0 0.0
    %307 = vmatpush.msra.mxu0 0.0
    %308 = vmatpush.msra.mxu0 0.0
    %309 = vmatpush.msra.mxu0 0.0
    %310 = vmatpush.msra.mxu0 0.0
    %311 = vmatpush.msra.mxu0 0.0
    %312 = vmatpush.msra.mxu0 0.0
    %313 = vmatpush.msra.mxu0 0.0
    %314 = vmatpush.msra.mxu0 0.0
    %315 = vmatpush.msra.mxu0 0.0
    %316 = vmatpush.msra.mxu0 0.0
    %317 = vmatpush.msra.mxu0 0.0
    %318 = vmatpush.msra.mxu0 0.0
    %319 = vmatpush.msra.mxu0 0.0
    %v320 = vand.u32 %v228, 4294901760
    %321 = vmatpush.msra.mxu0 %v320
    %v322 = vand.u32 %v80, 4294901760
    %v323 = vsub.f32 %v80, %v322
    %v324 = vand.u32 %v323, 4294901760
    %325 = vmatmul.f32.gmra.mxu0 %v324
    %v326 = vpop.f32.mrf.mxu0
    %v327 = vadd.f32 %v303, %v326
    %328 = vdwg.mxu0
    %329 = vmatpush.msra.mxu0 0.0
    %330 = vmatpush.msra.mxu0 0.0
    %331 = vmatpush.msra.mxu0 0.0
    %332 = vmatpush.msra.mxu0 0.0
    %333 = vmatpush.msra.mxu0 0.0
    %334 = vmatpush.msra.mxu0 0.0
    %335 = vmatpush.msra.mxu0 0.0
    %336 = vmatpush.msra.mxu0 0.0
    %337 = vmatpush.msra.mxu0 0.0
    %338 = vmatpush.msra.mxu0 0.0
    %339 = vmatpush.msra.mxu0 0.0
    %340 = vmatpush.msra.mxu0 0.0
    %341 = vmatpush.msra.mxu0 0.0
    %342 = vmatpush.msra.mxu0 0.0
    %343 = vmatpush.msra.mxu0 0.0
    %v344 = vand.u32 %v228, 4294901760
    %v345 = vsub.f32 %v228, %v344
    %v346 = vand.u32 %v345, 4294901760
    %347 = vmatpush.msra.mxu0 %v346
    %v348 = vand.u32 %v80, 4294901760
    %349 = vmatmul.f32.gmra.mxu0 %v348
    %v350 = vpop.f32.mrf.mxu0
    %v351 = vadd.f32 %v327, %v350
    %352 = vdwg.mxu0
    %353 = vmatpush.msra.mxu0 0.0
    %354 = vmatpush.msra.mxu0 0.0
    %355 = vmatpush.msra.mxu0 0.0
    %356 = vmatpush.msra.mxu0 0.0
    %357 = vmatpush.msra.mxu0 0.0
    %358 = vmatpush.msra.mxu0 0.0
    %359 = vmatpush.msra.mxu0 0.0
    %360 = vmatpush.msra.mxu0 0.0
    %361 = vmatpush.msra.mxu0 0.0
    %362 = vmatpush.msra.mxu0 0.0
    %363 = vmatpush.msra.mxu0 0.0
    %364 = vmatpush.msra.mxu0 0.0
    %365 = vmatpush.msra.mxu0 0.0
    %366 = vmatpush.msra.mxu0 0.0
    %367 = vmatpush.msra.mxu0 0.0
    %v368 = vand.u32 %v228, 4294901760
    %369 = vmatpush.msra.mxu0 %v368
    %v370 = vand.u32 %v80, 4294901760
    %371 = vmatmul.f32.gmra.mxu0 %v370
    %v372 = vpop.f32.mrf.mxu0
    %v373 = vadd.f32 %v351, %v372
    %374 = vdwg.mxu0
    %v375 = vld [vmem:[%s4] sm:$0x3]
    %v376 = vperm.slane %v375, 0
    %v377 = vmul.f32 %v226, %v376
    %v378 = vperm.slane %v375, 1
    %v379 = vadd.f32 %v377, %v378
    %v380 = vand.u32 2147483647, %v379
    %vm381 = vcmp.le.f32.partialorder %v380, 0.7853982
    %vm382 = vcmp.lt.s32.totalorder %v379, 0
    %v383 = vand.u32 %v379, 2139095040
    %v384 = vshrl.u32 %v383, 23
    %v385 = vsub.s32 %v384, 127
    %v386 = vand.u32 2147483647, %v379
    %v387 = vand.u32 %v386, 8388607
    %v388 = vor.u32 %v387, 8388608
    %v389 = vsub.s32 0, %v388
    %v390 = vadd.s32 %v385, 1
    %vm391 = vcmp.gt.s32.totalorder %v390, 0
    %v392 = vsel %vm391, %v390, 0
    %v393 = vshrl.u32 %v392, 5
    %v394 = vand.u32 %v392, 31
    %v395 = vsub.s32 32, %v394
    %v396 = vshrl.u32 683565275, %v395
    %v397 = vshll.u32 683565275, %v394
    %v398 = vshrl.u32 2475754826, %v395
    %v399 = vor.u32 %v397, %v398
    %v400 = vshll.u32 2475754826, %v394
    %v401 = vshrl.u32 2131351028, %v395
    %v402 = vor.u32 %v400, %v401
    %v403 = vshll.u32 2131351028, %v394
    %v404 = vshrl.u32 2102212464, %v395
    %v405 = vor.u32 %v403, %v404
    %v406 = vshll.u32 2102212464, %v394
    %v407 = vshrl.u32 920167782, %v395
    %v408 = vor.u32 %v406, %v407
    %v409 = vshll.u32 920167782, %v394
    %v410 = vshrl.u32 1326507024, %v395
    %v411 = vor.u32 %v409, %v410
    %vm412 = vcmp.lt.s32.totalorder %v393, 1
    %vm413 = vcmp.lt.s32.totalorder %v393, 2
    %vm414 = vcmp.lt.s32.totalorder %v393, 3
    %vm415 = vcmp.lt.s32.totalorder %v393, 4
    %v416 = vsel %vm412, %v396, %v399
    %v417 = vsel %vm415, %v405, 2102212464
    %v418 = vsel %vm414, %v402, %v417
    %v419 = vsel %vm413, %v416, %v418
    %v420 = vsel %vm412, %v399, %v402
    %v421 = vsel %vm415, %v408, 920167782
    %v422 = vsel %vm414, %v405, %v421
    %v423 = vsel %vm413, %v420, %v422
    %v424 = vsel %vm412, %v402, %v405
    %v425 = vsel %vm415, %v411, 1326507024
    %v426 = vsel %vm414, %v408, %v425
    %v427 = vsel %vm413, %v424, %v426
    %v428 = vshll.u32 %v388, 8
    %v429 = vand.u32 %v428, 65535
    %v430 = vshrl.u32 %v428, 16
    %v431 = vand.u32 %v427, 65535
    %v432 = vshrl.u32 %v427, 16
    %v433 = vmul.u32 %v429, %v431
    %v434 = vmul.u32 %v429, %v432
    %v435 = vmul.u32 %v430, %v431
    %v436 = vmul.u32 %v430, %v432
    %v437 = vshll.u32 %v434, 16
    %v438 = vshrl.u32 %v434, 16
    %v439 = vshll.u32 %v435, 16
    %v440 = vshrl.u32 %v435, 16
    %vm441 = vc.u32 %v433, %v437
    %v442 = vsel %vm441, 1, 0
    %v443 = vadd.s32 %v433, %v437
    %v444 = vadd.s32 %v436, %v442
    %vm445 = vc.u32 %v443, %v439
    %v446 = vsel %vm445, 1, 0
    %v447 = vadd.s32 %v443, %v439
    %v448 = vadd.s32 %v444, %v446
    %v449 = vadd.s32 %v448, %v438
    %v450 = vadd.s32 %v449, %v440
    %v451 = vand.u32 %v428, 65535
    %v452 = vshrl.u32 %v428, 16
    %v453 = vand.u32 %v423, 65535
    %v454 = vshrl.u32 %v423, 16
    %v455 = vmul.u32 %v451, %v453
    %v456 = vmul.u32 %v451, %v454
    %v457 = vmul.u32 %v452, %v453
    %v458 = vmul.u32 %v452, %v454
    %v459 = vshll.u32 %v456, 16
    %v460 = vshrl.u32 %v456, 16
    %v461 = vshll.u32 %v457, 16
    %v462 = vshrl.u32 %v457, 16
    %vm463 = vc.u32 %v455, %v459
    %v464 = vsel %vm463, 1, 0
    %v465 = vadd.s32 %v455, %v459
    %v466 = vadd.s32 %v458, %v464
    %vm467 = vc.u32 %v465, %v461
    %v468 = vsel %vm467, 1, 0
    %v469 = vadd.s32 %v465, %v461
    %v470 = vadd.s32 %v466, %v468
    %v471 = vadd.s32 %v470, %v460
    %v472 = vadd.s32 %v471, %v462
    %v473 = vmul.u32 %v428, %v419
    %v474 = vadd.s32 %v450, %v469
    %vm475 = vc.u32 %v450, %v469
    %v476 = vadd.s32 %v472, 1
    %v477 = vsel %vm475, %v476, %v472
    %v478 = vadd.s32 %v473, %v477
    %v479 = vadd.s32 %v478, 536870912
    %v480 = vshrl.u32 %v479, 30
    %v481 = vshll.u32 %v480, 30
    %v482 = vsub.s32 %v478, %v481
    %vm483 = vcmp.lt.s32.totalorder %v482, 0
    %v484 = vsub.s32 0, %v482
    %v485 = vsel %vm483, %v484, %v482
    %v486 = vclz %v485
    %v487 = vsub.s32 %v486, 2
    %vm488 = vcmp.gt.s32.totalorder 0, %v487
    %v489 = vsel %vm488, 0, %v487
    %v490 = vsub.s32 32, %v489
    %v491 = vshll.u32 %v482, %v489
    %v492 = vshrl.u32 %v474, %v490
    %v493 = vor.u32 %v491, %v492
    %v494 = vsub.s32 4294967266, %v489
    %v495 = vadd.s32 %v494, 127
    %v496 = vshll.u32 %v495, 23
    %v497 = vor.u32 4788187, %v496
    %v498 = vand.u32 2147483647, %v497
    %v500 = vcvt.s32.f32 %v493
    %v501 = vmul.f32 %v500, %v498
    %v502 = vxor.u32 %v501, 2147483648
    %v503 = vsel %vm382, %v502, %v501
    %v504 = vsub.s32 4, %v480
    %v505 = vsel %vm382, %v504, %v480
    %v506 = vsel %vm381, %v379, %v503
    %v507 = vsel %vm381, 0, %v505
    %v508 = vmul.f32 %v506, %v506
    %v509 = vmul.f32 %v508, -0.001358992
    %v510 = vadd.f32 %v509, 0.041655596
    %v511 = vmul.f32 %v508, %v510
    %v512 = vadd.f32 %v511, -0.4999988
    %v513 = vmul.f32 %v508, %v512
    %v514 = vadd.f32 1.0, %v513
    %v515 = vmul.f32 %v506, %v506
    %v516 = vmul.f32 %v515, -0.00019511016
    %v517 = vadd.f32 %v516, 0.008332121
    %v518 = vmul.f32 %v515, %v517
    %v519 = vadd.f32 %v518, -0.16666654
    %v520 = vmul.f32 %v515, %v519
    %v521 = vadd.f32 %v520, 1.0
    %v522 = vmul.f32 %v521, %v506
    %vm523 = vweird.f32 %v379
    %v524 = vadd.s32 %v507, 3
    %v525 = vand.u32 %v524, 3
    %vm526 = vcmp.lt.s32.totalorder %v525, 2
    %vm527 = vcmp.eq.s32.totalorder %v525, 0
    %v528 = vxor.u32 %v522, 2147483648
    %v529 = vsel %vm527, %v514, %v528
    %vm530 = vcmp.eq.s32.totalorder %v525, 2
    %v531 = vxor.u32 %v514, 2147483648
    %v532 = vsel %vm530, %v531, %v522
    %v533 = vsel %vm526, %v529, %v532
    %v534 = vsel %vm523, nan, %v533
    %v535 = vld [vmem:[#allocation2] sm:$0xff]
    %v536 = vmul.f32 %v534, %v373
    %v537 = vadd.f32 %v535, %v536
    %538 = vst [vmem:[#allocation10] sm:$0xff] %v537
    // Predicated region
    $region38: #{tpu_custom_call.1} parent=1 // pred_check
      _
    $region39: #{tpu_custom_call.1} parent=1 // pred_check_branch
      %540 = sbr.rel (0) target = $region41
    $region40: #{tpu_custom_call.1} parent=1 // pred_region
      %542 = vsyncadd [#allocation4], 0
      %s544 = sshll.u32 [#allocation10], 4
      %s545 = int_to_ptr.vmem [resolvable:$true] %s544
      %s546 = sshll.u32 %s5, 4
      %s547 = int_to_ptr.hbm [resolvable:$true] %s546
      %549 = dma.vmem_to_hbm [thread:$0]  %s545, 128, %s547, [#allocation4]
    $region41: #{tpu_custom_call.1} parent=1 // pred_fallthru
      _
    // Predicated region
    $region42: #{tpu_custom_call.1} parent=1 // pred_check
      _
    $region43: #{tpu_custom_call.1} parent=1 // pred_check_branch
      %551 = sbr.rel (0) target = $region45
    $region44: #{tpu_custom_call.1} parent=1 // pred_region
      %553 = dma.done [#allocation4], 128
    $region45: #{tpu_custom_call.1} parent=1 // pred_fallthru
      _
    %554 = vsyncpa [#allocation3], 1
    %555 = vsyncpa [#allocation6], 1
    %556 = vsyncpa [#allocation9], 1
    %557 = vsyncpa [#allocation4], 1

</llo_original>
